<compile_context>
chip_gen: v7x
topology: tpu7x:2x2x1
jax: 0.10.0
libtpu: 0.0.40
codegen_flags: <defaults>
</compile_context>

<pallas_src>
import functools

import jax
import jax.numpy as jnp
from jax.experimental import pallas as pl
from jax.experimental.pallas import tpu as pltpu

BN_EPS = 1e-5
LANE = 128


# ---------------------------------------------------------------------------
# Kernel 1: conv 1x1 (plain matmul) + per-channel sum / sumsq accumulation
# ---------------------------------------------------------------------------
def _matmul_stats_kernel(x_ref, w_ref, y_ref, ssum_ref, ssq_ref):
    @pl.when(pl.program_id(0) == 0)
    def _init():
        ssum_ref[...] = jnp.zeros_like(ssum_ref)
        ssq_ref[...] = jnp.zeros_like(ssq_ref)

    y = jnp.dot(x_ref[...], w_ref[...], preferred_element_type=jnp.float32)
    y_ref[...] = y.astype(y_ref.dtype)
    ssum_ref[...] += jnp.sum(y, axis=0, keepdims=True)
    ssq_ref[...] += jnp.sum(y * y, axis=0, keepdims=True)


def conv1x1_stats(x, w, *, block_rows):
    M, K = x.shape
    C = w.shape[1]
    return pl.pallas_call(
        _matmul_stats_kernel,
        out_shape=(jax.ShapeDtypeStruct((M, C), jnp.bfloat16),
                   jax.ShapeDtypeStruct((1, C), jnp.float32),
                   jax.ShapeDtypeStruct((1, C), jnp.float32)),
        grid=(M // block_rows,),
        in_specs=[pl.BlockSpec((block_rows, K), lambda i: (i, 0)),
                  pl.BlockSpec((K, C), lambda i: (0, 0))],
        out_specs=(pl.BlockSpec((block_rows, C), lambda i: (i, 0)),
                   pl.BlockSpec((1, C), lambda i: (0, 0)),
                   pl.BlockSpec((1, C), lambda i: (0, 0))),
        compiler_params=pltpu.CompilerParams(
            dimension_semantics=("arbitrary",)),
    )(x, w)


# ---------------------------------------------------------------------------
# Kernel 2: BN(prev) + my_relu fused into conv 1x1 + stats accumulation
# ---------------------------------------------------------------------------
def _bn_relu_matmul_stats_kernel(x_ref, scale_ref, shift_ref, w_ref,
                                 y_ref, ssum_ref, ssq_ref):
    @pl.when(pl.program_id(0) == 0)
    def _init():
        ssum_ref[...] = jnp.zeros_like(ssum_ref)
        ssq_ref[...] = jnp.zeros_like(ssq_ref)

    h = jnp.maximum(
        x_ref[...].astype(jnp.float32) * scale_ref[...] + shift_ref[...], 0.0)
    y = jnp.dot(h.astype(jnp.bfloat16), w_ref[...],
                preferred_element_type=jnp.float32)
    y_ref[...] = y.astype(y_ref.dtype)
    ssum_ref[...] += jnp.sum(y, axis=0, keepdims=True)
    ssq_ref[...] += jnp.sum(y * y, axis=0, keepdims=True)


def bn_relu_conv1x1_stats(x, scale, shift, w, *, block_rows):
    M, K = x.shape
    C = w.shape[1]
    return pl.pallas_call(
        _bn_relu_matmul_stats_kernel,
        out_shape=(jax.ShapeDtypeStruct((M, C), jnp.bfloat16),
                   jax.ShapeDtypeStruct((1, C), jnp.float32),
                   jax.ShapeDtypeStruct((1, C), jnp.float32)),
        grid=(M // block_rows,),
        in_specs=[pl.BlockSpec((block_rows, K), lambda i: (i, 0)),
                  pl.BlockSpec((1, K), lambda i: (0, 0)),
                  pl.BlockSpec((1, K), lambda i: (0, 0)),
                  pl.BlockSpec((K, C), lambda i: (0, 0))],
        out_specs=(pl.BlockSpec((block_rows, C), lambda i: (i, 0)),
                   pl.BlockSpec((1, C), lambda i: (0, 0)),
                   pl.BlockSpec((1, C), lambda i: (0, 0))),
        compiler_params=pltpu.CompilerParams(
            dimension_semantics=("arbitrary",)),
    )(x, scale, shift, w)


# ---------------------------------------------------------------------------
# Kernel 3: BN1 + my_relu fused into 3x3 conv (stride=1, pad=1) + stats.
# Per-image grid; the 3x3 conv is 9 shifted matmuls on an in-VMEM padded
# activation (no HBM im2col, no materialized padded array).
# ---------------------------------------------------------------------------
def _conv3x3_fused_kernel(y1_ref, scale_ref, shift_ref, w_ref,
                          y2_ref, ssum_ref, ssq_ref, hpad_ref, acc_ref):
    @pl.when(pl.program_id(0) == 0)
    def _init():
        ssum_ref[...] = jnp.zeros_like(ssum_ref)
        ssq_ref[...] = jnp.zeros_like(ssq_ref)

    _, H, W, C = y1_ref.shape

    # BN1 + my_relu on this image's raw conv1 output, written into a
    # zero-initialized f32 VMEM scratch (this IS the conv's padding=1).
    h = jnp.maximum(
        y1_ref[0].astype(jnp.float32) * scale_ref[...] + shift_ref[...], 0.0)
    hpad_ref[...] = jnp.zeros_like(hpad_ref)
    hpad_ref[1:1 + H, 1:1 + W, :] = h

    # 9-tap accumulation: shifted (H*W, C) x (C, C) bf16 MXU matmuls, f32 acc.
    acc_ref[...] = jnp.zeros_like(acc_ref)
    for kh in range(3):
        for kw in range(3):
            win = hpad_ref[kh:kh + H, kw:kw + W, :].reshape(H * W, C)
            acc_ref[...] += jnp.dot(win.astype(jnp.bfloat16),
                                    w_ref[kh * 3 + kw],
                                    preferred_element_type=jnp.float32)

    y = acc_ref[...]
    y2_ref[...] = y.reshape(1, H, W, C).astype(y2_ref.dtype)
    ssum_ref[...] += jnp.sum(y, axis=0, keepdims=True)
    ssq_ref[...] += jnp.sum(y * y, axis=0, keepdims=True)


def bn_relu_conv3x3_stats(y1_nhwc, scale, shift, w_taps):
    N, H, W, C = y1_nhwc.shape
    return pl.pallas_call(
        _conv3x3_fused_kernel,
        out_shape=(jax.ShapeDtypeStruct((N, H, W, C), jnp.bfloat16),
                   jax.ShapeDtypeStruct((1, C), jnp.float32),
                   jax.ShapeDtypeStruct((1, C), jnp.float32)),
        grid=(N,),
        in_specs=[pl.BlockSpec((1, H, W, C), lambda n: (n, 0, 0, 0)),
                  pl.BlockSpec((1, C), lambda n: (0, 0)),
                  pl.BlockSpec((1, C), lambda n: (0, 0)),
                  pl.BlockSpec((9, C, C), lambda n: (0, 0, 0))],
        out_specs=(pl.BlockSpec((1, H, W, C), lambda n: (n, 0, 0, 0)),
                   pl.BlockSpec((1, C), lambda n: (0, 0)),
                   pl.BlockSpec((1, C), lambda n: (0, 0))),
        scratch_shapes=[pltpu.VMEM((H + 2, W + 2, C), jnp.float32),
                        pltpu.VMEM((H * W, C), jnp.float32)],
        compiler_params=pltpu.CompilerParams(
            dimension_semantics=("arbitrary",)),
    )(y1_nhwc, scale, shift, w_taps)


# ---------------------------------------------------------------------------
# Kernel 4: BN3 + residual add + my_relu  (M-tiled, fully parallel)
# ---------------------------------------------------------------------------
def _bn_residual_relu_kernel(y_ref, scale_ref, shift_ref, res_ref, o_ref):
    out = (y_ref[...].astype(jnp.float32) * scale_ref[...] + shift_ref[...]
           + res_ref[...].astype(jnp.float32))
    o_ref[...] = jnp.maximum(out, 0.0).astype(o_ref.dtype)


def bn_residual_relu(y, scale, shift, res, *, block_rows):
    M, C = y.shape
    return pl.pallas_call(
        _bn_residual_relu_kernel,
        out_shape=jax.ShapeDtypeStruct((M, C), jnp.float32),
        grid=(M // block_rows,),
        in_specs=[pl.BlockSpec((block_rows, C), lambda i: (i, 0)),
                  pl.BlockSpec((1, C), lambda i: (0, 0)),
                  pl.BlockSpec((1, C), lambda i: (0, 0)),
                  pl.BlockSpec((block_rows, C), lambda i: (i, 0))],
        out_specs=pl.BlockSpec((block_rows, C), lambda i: (i, 0)),
        compiler_params=pltpu.CompilerParams(
            dimension_semantics=("parallel",)),
    )(y, scale, shift, res)


# ---------------------------------------------------------------------------
# Wrapper glue
# ---------------------------------------------------------------------------
def _round_up(n, m):
    return ((n + m - 1) // m) * m


def _pad_axis(a, axis, target):
    pad = target - a.shape[axis]
    if pad <= 0:
        return a
    widths = [(0, 0)] * a.ndim
    widths[axis] = (0, pad)
    return jnp.pad(a, widths)


def _pick_row_tile(M, target=1024):
    for cand in (min(target, M), 512, 256, 128, 64, 32, 16, 8):
        if cand <= M and M % cand == 0:
            return cand
    return M


def _fold_bn(ssum, ssq, count, gamma, beta):
    """Training-mode BatchNorm fold: returns (scale, shift) as (1, C) f32."""
    mean = ssum / count
    var = ssq / count - mean * mean          # biased variance
    inv = jax.lax.rsqrt(var + BN_EPS)
    scale = gamma * inv
    shift = beta - mean * scale
    return scale.astype(jnp.float32), shift.astype(jnp.float32)


def bottleneck_forward(x_nchw, params, stride=1, block_rows=None):
    # TODO(synk): stride > 1 / downsample != None paths are not implemented
    # (the reference module with downsample=None also requires stride == 1 and
    # in_channels == out_channels * expansion for the residual add).
    assert stride == 1, "only the downsample=None / stride=1 path is supported"

    N, Cin, H, W = x_nchw.shape
    w1, w2, w3 = params["w1"], params["w2"], params["w3"]
    cmid = w1.shape[0]
    cout = w3.shape[0]
    assert cout == Cin, "downsample=None requires Cin == Cout*expansion"

    cin_p = _round_up(Cin, LANE)
    cmid_p = _round_up(cmid, LANE)
    cout_p = _round_up(cout, LANE)

    M = N * H * W
    if block_rows is None:
        block_rows = _pick_row_tile(M)
    assert M % block_rows == 0 and block_rows % 8 == 0

    # NCHW -> channels-last (M, C), channels zero-padded to lane width, bf16.
    x_nhwc = jnp.transpose(x_nchw, (0, 2, 3, 1))
    x_flat = _pad_axis(x_nhwc.reshape(M, Cin), 1, cin_p).astype(jnp.bfloat16)

    # Weights -> matmul layout, zero-padded to lane-dense K and C, bf16.
    w1_mat = _pad_axis(_pad_axis(w1.reshape(cmid, Cin).T, 0, cin_p),
                       1, cmid_p).astype(jnp.bfloat16)
    w2_taps = jnp.transpose(w2, (2, 3, 1, 0)).reshape(9, cmid, cmid)
    w2_taps = _pad_axis(_pad_axis(w2_taps, 1, cmid_p),
                        2, cmid_p).astype(jnp.bfloat16)
    w3_mat = _pad_axis(_pad_axis(w3.reshape(cout, cmid).T, 0, cmid_p),
                       1, cout_p).astype(jnp.bfloat16)

    # BN affine params, zero-padded (zero gamma keeps padded channels exact 0).
    g1 = _pad_axis(params["gamma1"], 1, cmid_p)
    b1 = _pad_axis(params["beta1"], 1, cmid_p)
    g2 = _pad_axis(params["gamma2"], 1, cmid_p)
    b2 = _pad_axis(params["beta2"], 1, cmid_p)
    g3 = _pad_axis(params["gamma3"], 1, cout_p)
    b3 = _pad_axis(params["beta3"], 1, cout_p)

    count = float(M)

    # conv1 (1x1) + batch statistics
    y1, s1, q1 = conv1x1_stats(x_flat, w1_mat, block_rows=block_rows)
    scale1, shift1 = _fold_bn(s1, q1, count, g1, b1)

    # conv2 (3x3, pad=1): bn1 + relu fused in, 9-tap in-VMEM accumulation
    y2, s2, q2 = bn_relu_conv3x3_stats(y1.reshape(N, H, W, cmid_p),
                                       scale1, shift1, w2_taps)
    scale2, shift2 = _fold_bn(s2, q2, count, g2, b2)

    # conv3 (1x1): bn2 + relu fused in
    y3, s3, q3 = bn_relu_conv1x1_stats(y2.reshape(M, cmid_p), scale2, shift2,
                                       w3_mat, block_rows=block_rows)
    scale3, shift3 = _fold_bn(s3, q3, count, g3, b3)

    # bn3 + residual add + relu
    out_flat = bn_residual_relu(y3, scale3, shift3, x_flat,
                                block_rows=block_rows)

    out = out_flat.reshape(N, H, W, cout_p)[..., :cout]
    return jnp.transpose(out, (0, 3, 1, 2))           # back to NCHW


# ---------------------------------------------------------------------------
# Pure-JAX f32 reference (PyTorch training-mode BN / my_relu semantics)
# ---------------------------------------------------------------------------
def _ref_bn(y):
    mean = y.mean(axis=(0, 2, 3), keepdims=True)
    var = ((y - mean) ** 2).mean(axis=(0, 2, 3), keepdims=True)
    return (y - mean) / jnp.sqrt(var + BN_EPS)


def _ref_relu(x):
    return jnp.where(x > 0, x, jnp.zeros_like(x))


def bottleneck_reference(x, params, stride=1):
    dn = ("NCHW", "OIHW", "NCHW")
    conv = functools.partial(jax.lax.conv_general_dilated,
                             dimension_numbers=dn)
    out = conv(x, params["w1"], (1, 1), "VALID")
    out = _ref_relu(_ref_bn(out))
    out = conv(out, params["w2"], (stride, stride), [(1, 1), (1, 1)])
    out = _ref_relu(_ref_bn(out))
    out = conv(out, params["w3"], (1, 1), "VALID")
    out = _ref_bn(out)
    out = out + x                 # downsample=None
    return _ref_relu(out)


# ---------------------------------------------------------------------------
if __name__ == "__main__":
    # batch=2, out_channels=8 (expansion 4 -> 32 == in_channels), spatial 16x16
    N, Cin, H, W = 2, 32, 16, 16
    cmid = 8
    cout = cmid * 4

    key = jax.random.PRNGKey(0)
    k0, k1, k2, k3 = jax.random.split(key, 4)

    x = jax.random.normal(k0, (N, Cin, H, W), jnp.float32)

    params = {
        "w1": jax.random.normal(k1, (cmid, Cin, 1, 1), jnp.float32) * 0.1,
        "w2": jax.random.normal(k2, (cmid, cmid, 3, 3), jnp.float32) * 0.1,
        "w3": jax.random.normal(k3, (cout, cmid, 1, 1), jnp.float32) * 0.1,
        "gamma1": jnp.ones((1, cmid), jnp.float32),
        "beta1": jnp.zeros((1, cmid), jnp.float32),
        "gamma2": jnp.ones((1, cmid), jnp.float32),
        "beta2": jnp.zeros((1, cmid), jnp.float32),
        "gamma3": jnp.ones((1, cout), jnp.float32),
        "beta3": jnp.zeros((1, cout), jnp.float32),
    }

    # block_rows=128 -> grid of 4 row tiles: exercises the cross-tile BN-stat
    # accumulation path, not just the single-tile degenerate case.
    out = bottleneck_forward(x, params, stride=1, block_rows=128)
    out = jax.block_until_ready(out)

    ref = jax.block_until_ready(bottleneck_reference(x, params, stride=1))
    assert out.shape == (N, cout, H, W)
    # bf16 matmul path vs f32 reference: check a relative-style error bound.
    err = float(jnp.max(jnp.abs(out - ref) / (1.0 + jnp.abs(ref))))
    assert err < 5e-2, f"mismatch vs reference: max rel-ish err = {err}"

    print("KERNEL_OK")
</pallas_src>

<mosaic_0001>
module attributes {stable_mosaic.version = 11 : i64} {
  func.func @_matmul_stats_kernel(%arg0: i32, %arg1: memref<128x128xbf16, #tpu.memory_space<vmem>>, %arg2: memref<128x128xbf16, #tpu.memory_space<vmem>>, %arg3: memref<128x128xbf16, #tpu.memory_space<vmem>>, %arg4: memref<1x128xf32, #tpu.memory_space<vmem>>, %arg5: memref<1x128xf32, #tpu.memory_space<vmem>>) attributes {dimension_semantics = [#tpu.dimension_semantics<arbitrary>], iteration_bounds = array<i64: 4>, scalar_prefetch = 0 : i64, scratch_operands = 0 : i64, tpu.core_type = #tpu.core_type<tc>, window_params = [{transform_indices = @transform_0, window_bounds = array<i64: 128, 128>}, {pipeline_mode = #tpu.pipeline_mode<synchronous>, transform_indices = @transform_1, window_bounds = array<i64: 128, 128>}, {transform_indices = @transform_2, window_bounds = array<i64: 128, 128>}, {pipeline_mode = #tpu.pipeline_mode<synchronous>, transform_indices = @transform_3, window_bounds = array<i64: 1, 128>}, {pipeline_mode = #tpu.pipeline_mode<synchronous>, transform_indices = @transform_4, window_bounds = array<i64: 1, 128>}]} {
    %c0_i32 = arith.constant 0 : i32
    %0 = arith.cmpi eq, %arg0, %c0_i32 : i32
    %1 = arith.extui %0 : i1 to i32
    %c0_i32_0 = arith.constant 0 : i32
    %2 = arith.cmpi ne, %1, %c0_i32_0 : i32
    scf.if %2 {
      %cst_16 = arith.constant 0.000000e+00 : f32
      %19 = vector.broadcast %cst_16 : f32 to vector<1x128xf32>
      %c0_17 = arith.constant 0 : index
      %c0_18 = arith.constant 0 : index
      %20 = vector.load %arg4[%c0_17, %c0_18] : memref<1x128xf32, #tpu.memory_space<vmem>>, vector<1x128xf32>
      tpu.vector_store %arg4[%c0_17, %c0_18], %19 {strides = array<i32>} : memref<1x128xf32, #tpu.memory_space<vmem>>, vector<1x128xf32>,
      %cst_19 = arith.constant 0.000000e+00 : f32
      %21 = vector.broadcast %cst_19 : f32 to vector<1x128xf32>
      %c0_20 = arith.constant 0 : index
      %c0_21 = arith.constant 0 : index
      %22 = vector.load %arg5[%c0_20, %c0_21] : memref<1x128xf32, #tpu.memory_space<vmem>>, vector<1x128xf32>
      tpu.vector_store %arg5[%c0_20, %c0_21], %21 {strides = array<i32>} : memref<1x128xf32, #tpu.memory_space<vmem>>, vector<1x128xf32>,
    } else {
    }
    %c0 = arith.constant 0 : index
    %c0_1 = arith.constant 0 : index
    %3 = vector.load %arg1[%c0, %c0_1] : memref<128x128xbf16, #tpu.memory_space<vmem>>, vector<128x128xbf16>
    %c0_2 = arith.constant 0 : index
    %c0_3 = arith.constant 0 : index
    %4 = vector.load %arg2[%c0_2, %c0_3] : memref<128x128xbf16, #tpu.memory_space<vmem>>, vector<128x128xbf16>
    %cst = arith.constant dense<0.000000e+00> : vector<128x128xf32>
    %5 = tpu.matmul %3, %4, %cst {dimension_numbers = #tpu.dot_dimension_numbers<[1], [0], [0], [1], [0, 0, 1, 1], [], []>} : vector<128x128xbf16>, vector<128x128xbf16>, vector<128x128xf32> -> vector<128x128xf32>
    %6 = arith.truncf %5 : vector<128x128xf32> to vector<128x128xbf16>
    %c0_4 = arith.constant 0 : index
    %c0_5 = arith.constant 0 : index
    %7 = vector.load %arg3[%c0_4, %c0_5] : memref<128x128xbf16, #tpu.memory_space<vmem>>, vector<128x128xbf16>
    tpu.vector_store %arg3[%c0_4, %c0_5], %6 {strides = array<i32>} : memref<128x128xbf16, #tpu.memory_space<vmem>>, vector<128x128xbf16>,
    %c0_6 = arith.constant 0 : index
    %c0_7 = arith.constant 0 : index
    %8 = vector.load %arg4[%c0_6, %c0_7] : memref<1x128xf32, #tpu.memory_space<vmem>>, vector<1x128xf32>
    %cst_8 = arith.constant dense<0.000000e+00> : vector<128xf32>
    %9 = vector.multi_reduction <add>, %5, %cst_8 [0] : vector<128x128xf32> to vector<128xf32>
    %10 = vector.shape_cast %9 : vector<128xf32> to vector<1x128xf32>
    %11 = arith.addf %8, %10 : vector<1x128xf32>
    %c0_9 = arith.constant 0 : index
    %c0_10 = arith.constant 0 : index
    %12 = vector.load %arg4[%c0_9, %c0_10] : memref<1x128xf32, #tpu.memory_space<vmem>>, vector<1x128xf32>
    tpu.vector_store %arg4[%c0_9, %c0_10], %11 {strides = array<i32>} : memref<1x128xf32, #tpu.memory_space<vmem>>, vector<1x128xf32>,
    %c0_11 = arith.constant 0 : index
    %c0_12 = arith.constant 0 : index
    %13 = vector.load %arg5[%c0_11, %c0_12] : memref<1x128xf32, #tpu.memory_space<vmem>>, vector<1x128xf32>
    %14 = arith.mulf %5, %5 : vector<128x128xf32>
    %cst_13 = arith.constant dense<0.000000e+00> : vector<128xf32>
    %15 = vector.multi_reduction <add>, %14, %cst_13 [0] : vector<128x128xf32> to vector<128xf32>
    %16 = vector.shape_cast %15 : vector<128xf32> to vector<1x128xf32>
    %17 = arith.addf %13, %16 : vector<1x128xf32>
    %c0_14 = arith.constant 0 : index
    %c0_15 = arith.constant 0 : index
    %18 = vector.load %arg5[%c0_14, %c0_15] : memref<1x128xf32, #tpu.memory_space<vmem>>, vector<1x128xf32>
    tpu.vector_store %arg5[%c0_14, %c0_15], %17 {strides = array<i32>} : memref<1x128xf32, #tpu.memory_space<vmem>>, vector<1x128xf32>,
    return
  }
  func.func @transform_0(%arg0: i32) -> (i32, i32) {
    %c0_i32 = arith.constant 0 : i32
    %c0_i32_0 = arith.constant 0 : i32
    return %arg0, %c0_i32 : i32, i32
  }
  func.func @transform_1(%arg0: i32) -> (i32, i32) {
    %c0_i32 = arith.constant 0 : i32
    %c0_i32_0 = arith.constant 0 : i32
    %c0_i32_1 = arith.constant 0 : i32
    return %c0_i32, %c0_i32_0 : i32, i32
  }
  func.func @transform_2(%arg0: i32) -> (i32, i32) {
    %c0_i32 = arith.constant 0 : i32
    %c0_i32_0 = arith.constant 0 : i32
    return %arg0, %c0_i32 : i32, i32
  }
  func.func @transform_3(%arg0: i32) -> (i32, i32) {
    %c0_i32 = arith.constant 0 : i32
    %c0_i32_0 = arith.constant 0 : i32
    %c0_i32_1 = arith.constant 0 : i32
    return %c0_i32, %c0_i32_0 : i32, i32
  }
  func.func @transform_4(%arg0: i32) -> (i32, i32) {
    %c0_i32 = arith.constant 0 : i32
    %c0_i32_0 = arith.constant 0 : i32
    %c0_i32_1 = arith.constant 0 : i32
    return %c0_i32, %c0_i32_0 : i32, i32
  }
}

</mosaic_0001>

<llo_original>
// kernel: tpu_custom_call.1
$region0: #{tpu_custom_call.1}
  #allocation0 [shape = 'u32[]', space=smem, size = 0x4, offset = 0x4, fixed_abs, tag = 'smem constant byte address 0x4 - core index']
  #allocation1 [shape = 'u32[144,128]{1,0:T(1,128)}', space=vmem, size = 0x12000, scoped, tag = 'internal scratch']
  %s0 = inlined_call_operand.hbm [shape: bf16[512,128], index: 0, kind: input, shape index: {}]
  %s1 = inlined_call_operand.hbm [shape: bf16[128,128], index: 1, kind: input, shape index: {}]
  %s2 = inlined_call_operand.hbm [shape: bf16[512,128], index: 2, kind: output, shape index: {0}]
  %s3 = inlined_call_operand.hbm [shape: f32[1,128], index: 3, kind: output, shape index: {1}]
  %s4 = inlined_call_operand.hbm [shape: f32[1,128], index: 4, kind: output, shape index: {2}]
  %5 = xla_tuple %s2, %s3, %s4
  %s6 = sld [smem:[#allocation0]]
  $region69: #{tpu_custom_call.1} parent=0
    _
  %s8 = ssub.s32 1, %s6
  %s9 = scalar_select 0, %s8, %s6
  $region1: #{tpu_custom_call.1} parent=0
    #allocation2 [shape = 'u8[65536]{0}', space=vmem, size = 0x10000, scoped, tag = 'input window, operand 0']
    #allocation3 [shape = 's32[2]{0}', space=sflag, size = 0x8, scoped, tag = 'scoped memory for tpu_custom_call.1']
    #allocation4 [shape = 's32[2]{0}', space=sflag, size = 0x8, scoped, tag = 'scoped memory for tpu_custom_call.1']
    #allocation5 [shape = 'u8[32768]{0}', space=vmem, size = 0x8000, scoped, tag = 'input window, operand 1, single buffered']
    #allocation6 [shape = 's32[1]{0}', space=sflag, size = 0x4, scoped, tag = 'scoped memory for tpu_custom_call.1']
    #allocation7 [shape = 'u8[65536]{0}', space=vmem, size = 0x10000, scoped, tag = 'output window, operand 0']
    #allocation8 [shape = 'u8[512]{0}', space=vmem, size = 0x400, scoped, tag = 'output window, operand 1, single buffered']
    #allocation9 [shape = 's32[1]{0}', space=sflag, size = 0x4, scoped, tag = 'scoped memory for tpu_custom_call.1']
    #allocation10 [shape = 'u8[512]{0}', space=vmem, size = 0x400, scoped, tag = 'output window, operand 2, single buffered']
    %10 = vsyncpa [#allocation3], 0
    %s11 = scalar_lea.sflag [#allocation3], 1
    %12 = vsyncpa %s11, 0
    %13 = vsyncpa [#allocation6], 0
    %14 = vsyncpa [#allocation4], 0
    %s15 = scalar_lea.sflag [#allocation4], 1
    %16 = vsyncpa %s15, 0
    %17 = vsyncpa [#allocation9], 0
    loop: start=0, step=1, limit=6
    $region2: #{tpu_custom_call.1} parent=1 // loop_pre_header
      _
    $region3: #{tpu_custom_call.1} parent=1 // loop_header
      %s19 = sphi 0, %s23
      %p20 = scmp.ge.s32.totalorder %s19, 6
      %s29 = sphi 0, %s31
      %s32 = sphi 0, %s29
      %s33 = sphi 0, %s32
      %s49 = sphi 0, %s33
      %s53 = sphi 0, %s53
      %s55 = sphi 0, %s53
      %s56 = sphi 0, %s55
      %s70 = sphi 0, %s56
      %s76 = sphi 0, %s78
      %s79 = sphi 0, %s76
      %s80 = sphi 0, %s79
      %s96 = sphi 0, %s80
      %s100 = sphi 0, %s100
      %s102 = sphi 0, %s100
      %s103 = sphi 0, %s102
      %s117 = sphi 0, %s103
      %s121 = sphi 0, %s121
      %s123 = sphi 0, %s121
      %s124 = sphi 0, %s123
      %s138 = sphi 0, %s124
    $region4: #{tpu_custom_call.1} parent=1 // loop_header_branch
      %22 = sbr.rel (%p20) target = $region8
    $region5: #{tpu_custom_call.1} parent=1 // loop_body
      %s24 = ssub.s32 %s19, 1
      %s25 = ssub.s32 %s19, 2
      %s26 = sadd.s32 %s19, 1
      %s27 = ssub.s32 %s19, %s26
      %p28 = scmp.eq.s32.totalorder %s27, 0
      %s30 = sadd.s32 %s29, 1
      %s31 = scalar_select %p28, %s29, %s30
      %p34 = pneg %p28
      %p35 = scmp.eq.s32.totalorder %s19, 3
      %p36 = por %p34, %p35
      %p37 = scmp.ne.s32.totalorder %s29, %s32
      %p38 = scmp.eq.s32.totalorder %s19, 0
      %p39 = por %p37, %p38
      %p40 = scmp.ne.s32.totalorder %s29, %s32
      %p41 = scmp.eq.s32.totalorder %s24, 3
      %p42 = por %p40, %p41
      %p43 = scmp.ne.s32.totalorder %s32, %s33
      %p44 = scmp.eq.s32.totalorder %s24, 0
      %p45 = por %p43, %p44
      %p46 = scmp.ne.s32.totalorder %s32, %s33
      %p47 = scmp.eq.s32.totalorder %s25, 3
      %p48 = por %p46, %p47
      %p50 = scmp.ne.s32.totalorder %s33, %s49
      %p51 = scmp.eq.s32.totalorder %s25, 0
      %p52 = por %p50, %p51
      %s54 = sadd.s32 %s53, 1
      %p57 = scmp.eq.s32.totalorder %s19, 3
      %p58 = scmp.ne.s32.totalorder %s53, %s55
      %p59 = scmp.eq.s32.totalorder %s19, 0
      %p60 = por %p58, %p59
      %p61 = scmp.ne.s32.totalorder %s53, %s55
      %p62 = scmp.eq.s32.totalorder %s24, 3
      %p63 = por %p61, %p62
      %p64 = scmp.ne.s32.totalorder %s55, %s56
      %p65 = scmp.eq.s32.totalorder %s24, 0
      %p66 = por %p64, %p65
      %p67 = scmp.ne.s32.totalorder %s55, %s56
      %p68 = scmp.eq.s32.totalorder %s25, 3
      %p69 = por %p67, %p68
      %p71 = scmp.ne.s32.totalorder %s56, %s70
      %p72 = scmp.eq.s32.totalorder %s25, 0
      %p73 = por %p71, %p72
      %s74 = ssub.s32 %s19, %s26
      %p75 = scmp.eq.s32.totalorder %s74, 0
      %s77 = sadd.s32 %s76, 1
      %s78 = scalar_select %p75, %s76, %s77
      %p81 = pneg %p75
      %p82 = scmp.eq.s32.totalorder %s19, 3
      %p83 = por %p81, %p82
      %p84 = scmp.ne.s32.totalorder %s76, %s79
      %p85 = scmp.eq.s32.totalorder %s19, 0
      %p86 = por %p84, %p85
      %p87 = scmp.ne.s32.totalorder %s76, %s79
      %p88 = scmp.eq.s32.totalorder %s24, 3
      %p89 = por %p87, %p88
      %p90 = scmp.ne.s32.totalorder %s79, %s80
      %p91 = scmp.eq.s32.totalorder %s24, 0
      %p92 = por %p90, %p91
      %p93 = scmp.ne.s32.totalorder %s79, %s80
      %p94 = scmp.eq.s32.totalorder %s25, 3
      %p95 = por %p93, %p94
      %p97 = scmp.ne.s32.totalorder %s80, %s96
      %p98 = scmp.eq.s32.totalorder %s25, 0
      %p99 = por %p97, %p98
      %s101 = sadd.s32 %s100, 1
      %p104 = scmp.eq.s32.totalorder %s19, 3
      %p105 = scmp.ne.s32.totalorder %s100, %s102
      %p106 = scmp.eq.s32.totalorder %s19, 0
      %p107 = por %p105, %p106
      %p108 = scmp.ne.s32.totalorder %s100, %s102
      %p109 = scmp.eq.s32.totalorder %s24, 3
      %p110 = por %p108, %p109
      %p111 = scmp.ne.s32.totalorder %s102, %s103
      %p112 = scmp.eq.s32.totalorder %s24, 0
      %p113 = por %p111, %p112
      %p114 = scmp.ne.s32.totalorder %s102, %s103
      %p115 = scmp.eq.s32.totalorder %s25, 3
      %p116 = por %p114, %p115
      %p118 = scmp.ne.s32.totalorder %s103, %s117
      %p119 = scmp.eq.s32.totalorder %s25, 0
      %p120 = por %p118, %p119
      %s122 = sadd.s32 %s121, 1
      %p125 = scmp.eq.s32.totalorder %s19, 3
      %p126 = scmp.ne.s32.totalorder %s121, %s123
      %p127 = scmp.eq.s32.totalorder %s19, 0
      %p128 = por %p126, %p127
      %p129 = scmp.ne.s32.totalorder %s121, %s123
      %p130 = scmp.eq.s32.totalorder %s24, 3
      %p131 = por %p129, %p130
      %p132 = scmp.ne.s32.totalorder %s123, %s124
      %p133 = scmp.eq.s32.totalorder %s24, 0
      %p134 = por %p132, %p133
      %p135 = scmp.ne.s32.totalorder %s123, %s124
      %p136 = scmp.eq.s32.totalorder %s25, 3
      %p137 = por %p135, %p136
      %p139 = scmp.ne.s32.totalorder %s124, %s138
      %p140 = scmp.eq.s32.totalorder %s25, 0
      %p141 = por %p139, %p140
      %p142 = scmp.le.s32.totalorder 1, %s19
      %p143 = scmp.lt.s32.totalorder %s19, 5
      %p144 = pnand %p142, %p143
      %p145 = pneg %p144
      // Predicated region
      $region9: #{tpu_custom_call.1} parent=5 // pred_check
        _
      $region10: #{tpu_custom_call.1} parent=5 // pred_check_branch
        %147 = sbr.rel (%p144) target = $region12
      $region11: #{tpu_custom_call.1} parent=5 // pred_region
        %s148 = ssub.s32 %s19, 1
        // Predicated region
        $region13: #{tpu_custom_call.1} parent=11 // pred_check
          %p149 = pneg %p66
        $region14: #{tpu_custom_call.1} parent=11 // pred_check_branch
          %151 = sbr.rel (%p149) target = $region16
        $region15: #{tpu_custom_call.1} parent=11 // pred_region
          %s153 = ssub.s32 1024, 1024
          %154 = vsyncadd [#allocation6], %s153
          %s155 = sshll.u32 [#allocation5], 4
          %s156 = int_to_ptr.vmem [resolvable:$true] %s155
          %161 = dma.hbm_to_vmem [thread:$0]  %s1, 1024, %s156, [#allocation6], 64, 64, 4
        $region16: #{tpu_custom_call.1} parent=11 // pred_fallthru
          _
      $region12: #{tpu_custom_call.1} parent=5 // pred_fallthru
        _
      %p162 = scmp.lt.s32.totalorder %s19, 4
      // Predicated region
      $region17: #{tpu_custom_call.1} parent=5 // pred_check
        %p163 = pneg %p162
      $region18: #{tpu_custom_call.1} parent=5 // pred_check_branch
        %165 = sbr.rel (%p163) target = $region20
      $region19: #{tpu_custom_call.1} parent=5 // pred_region
        // Predicated region
        $region21: #{tpu_custom_call.1} parent=19 // pred_check
          %p166 = pneg %p39
        $region22: #{tpu_custom_call.1} parent=19 // pred_check_branch
          %168 = sbr.rel (%p166) target = $region24
        $region23: #{tpu_custom_call.1} parent=19 // pred_region
          %s169 = sand.u32 %s29, 1
          %s170 = scalar_lea.sflag [#allocation3], %s169
          %s171 = sand.u32 %s29, 1
          %s172 = smul.addr %s171, 64
          %s173 = scalar_lea.vmem [#allocation2], %s172
          %s174 = smul.u32 16, %s19
          %s176 = ssub.s32 1024, 1024
          %177 = vsyncadd %s170, %s176
          %s178 = smul.addr %s174, 64
          %s179 = scalar_lea.hbm %s0, %s178
          %s180 = sshll.u32 %s173, 4
          %s181 = int_to_ptr.vmem [resolvable:$true] %s180
          %186 = dma.hbm_to_vmem [thread:$0]  %s179, 1024, %s181, %s170, 64, 64, 4
        $region24: #{tpu_custom_call.1} parent=19 // pred_fallthru
          _
      $region20: #{tpu_custom_call.1} parent=5 // pred_fallthru
        _
      %p187 = scmp.le.s32.totalorder 1, %s19
      %p188 = scmp.lt.s32.totalorder %s19, 5
      %p189 = pnand %p187, %p188
      %p190 = pneg %p189
      // Predicated region
      $region25: #{tpu_custom_call.1} parent=5 // pred_check
        _
      $region26: #{tpu_custom_call.1} parent=5 // pred_check_branch
        %192 = sbr.rel (%p189) target = $region28
      $region27: #{tpu_custom_call.1} parent=5 // pred_region
        %s193 = ssub.s32 %s19, 1
        %s194 = sand.u32 %s32, 1
        %s195 = scalar_lea.sflag [#allocation3], %s194
        %s196 = sand.u32 %s32, 1
        %s197 = smul.addr %s196, 64
        %s198 = scalar_lea.vmem [#allocation2], %s197
        // Predicated region
        $region29: #{tpu_custom_call.1} parent=27 // pred_check
          %p199 = pneg %p45
        $region30: #{tpu_custom_call.1} parent=27 // pred_check_branch
          %201 = sbr.rel (%p199) target = $region32
        $region31: #{tpu_custom_call.1} parent=27 // pred_region
          %202 = dma.done %s195, 1024
        $region32: #{tpu_custom_call.1} parent=27 // pred_fallthru
          _
        // Predicated region
        $region33: #{tpu_custom_call.1} parent=27 // pred_check
          %p203 = pneg %p66
        $region34: #{tpu_custom_call.1} parent=27 // pred_check_branch
          %205 = sbr.rel (%p203) target = $region36
        $region35: #{tpu_custom_call.1} parent=27 // pred_region
          %206 = dma.done [#allocation6], 1024
        $region36: #{tpu_custom_call.1} parent=27 // pred_fallthru
          _
        %s207 = sand.u32 %s32, 1
        %s208 = scalar_lea.sflag [#allocation3], %s207
        %s209 = sand.u32 %s32, 1
        %s210 = smul.addr %s209, 64
        %s211 = scalar_lea.vmem [#allocation2], %s210
        %p212 = pneg %p45
        %p213 = pneg %p42
        %p214 = pneg %p66
        %p215 = pneg %p63
        %p216 = pneg %p92
        %p217 = pneg %p89
        %s218 = sand.u32 %s79, 1
        %s219 = scalar_lea.sflag [#allocation4], %s218
        %s220 = sand.u32 %s79, 1
        %s221 = smul.addr %s220, 64
        %s222 = scalar_lea.vmem [#allocation7], %s221
        %p223 = pneg %p113
        %p224 = pneg %p110
        %p225 = pneg %p134
        %p226 = pneg %p131
        %s227 = smul.u32 16, %s24
        %s228 = smul.u32 16, %s24
        %p230 = scmp.eq.s32.totalorder %s24, 0
        // Predicated region
        $region37: #{tpu_custom_call.1} parent=27 // pred_check
          %p231 = pneg %p230
        $region38: #{tpu_custom_call.1} parent=27 // pred_check_branch
          %233 = sbr.rel (%p231) target = $region40
        $region39: #{tpu_custom_call.1} parent=27 // pred_region
          %234 = vst [vmem:[#allocation8] sm:$0x1] 0.0
          %235 = vst [vmem:[#allocation10] sm:$0x1] 0.0
        $region40: #{tpu_custom_call.1} parent=27 // pred_fallthru
          _
        %v236 = vld [vmem:[%s198] sm:$0xf]
        %v237 = vld [vmem:[%s198 + $0x4] sm:$0xf]
        %v238 = vld [vmem:[%s198 + $0x8] sm:$0xf]
        %v239 = vld [vmem:[%s198 + $0xc] sm:$0xf]
        %v240 = vld [vmem:[%s198 + $0x10] sm:$0xf]
        %v241 = vld [vmem:[%s198 + $0x14] sm:$0xf]
        %v242 = vld [vmem:[%s198 + $0x18] sm:$0xf]
        %v243 = vld [vmem:[%s198 + $0x1c] sm:$0xf]
        %v244 = vld [vmem:[%s198 + $0x20] sm:$0xf]
        %v245 = vld [vmem:[%s198 + $0x24] sm:$0xf]
        %v246 = vld [vmem:[%s198 + $0x28] sm:$0xf]
        %v247 = vld [vmem:[%s198 + $0x2c] sm:$0xf]
        %v248 = vld [vmem:[%s198 + $0x30] sm:$0xf]
        %v249 = vld [vmem:[%s198 + $0x34] sm:$0xf]
        %v250 = vld [vmem:[%s198 + $0x38] sm:$0xf]
        %v251 = vld [vmem:[%s198 + $0x3c] sm:$0xf]
        %v252 = vld [vmem:[#allocation5] sm:$0xf]
        %v253 = vld [vmem:[#allocation5 + $0x4] sm:$0xf]
        %v254 = vld [vmem:[#allocation5 + $0x8] sm:$0xf]
        %v255 = vld [vmem:[#allocation5 + $0xc] sm:$0xf]
        %v256 = vld [vmem:[#allocation5 + $0x10] sm:$0xf]
        %v257 = vld [vmem:[#allocation5 + $0x14] sm:$0xf]
        %v258 = vld [vmem:[#allocation5 + $0x18] sm:$0xf]
        %v259 = vld [vmem:[#allocation5 + $0x1c] sm:$0xf]
        %v260 = vld [vmem:[#allocation5 + $0x20] sm:$0xf]
        %v261 = vld [vmem:[#allocation5 + $0x24] sm:$0xf]
        %v262 = vld [vmem:[#allocation5 + $0x28] sm:$0xf]
        %v263 = vld [vmem:[#allocation5 + $0x2c] sm:$0xf]
        %v264 = vld [vmem:[#allocation5 + $0x30] sm:$0xf]
        %v265 = vld [vmem:[#allocation5 + $0x34] sm:$0xf]
        %v266 = vld [vmem:[#allocation5 + $0x38] sm:$0xf]
        %v267 = vld [vmem:[#allocation5 + $0x3c] sm:$0xf]
        %v284 = vunpack.c.l.b16 %v236
        %v285 = vunpack.c.l.b16 %v237
        %v286 = vunpack.c.l.b16 %v238
        %v287 = vunpack.c.l.b16 %v239
        %v288 = vunpack.c.l.b16 %v240
        %v289 = vunpack.c.l.b16 %v241
        %v290 = vunpack.c.l.b16 %v242
        %v291 = vunpack.c.l.b16 %v243
        %v292 = vunpack.c.l.b16 %v244
        %v293 = vunpack.c.l.b16 %v245
        %v294 = vunpack.c.l.b16 %v246
        %v295 = vunpack.c.l.b16 %v247
        %v296 = vunpack.c.l.b16 %v248
        %v297 = vunpack.c.l.b16 %v249
        %v298 = vunpack.c.l.b16 %v250
        %v299 = vunpack.c.l.b16 %v251
        %v300 = vpack.c.b16 %v285, %v284
        %v301 = vpack.c.b16 %v287, %v286
        %v302 = vpack.c.b16 %v289, %v288
        %v303 = vpack.c.b16 %v291, %v290
        %v304 = vpack.c.b16 %v293, %v292
        %v305 = vpack.c.b16 %v295, %v294
        %v306 = vpack.c.b16 %v297, %v296
        %v307 = vpack.c.b16 %v299, %v298
        %v332 = vunpack.c.l.b16 %v252
        %v333 = vunpack.c.l.b16 %v253
        %v334 = vunpack.c.l.b16 %v254
        %v335 = vunpack.c.l.b16 %v255
        %v336 = vunpack.c.l.b16 %v256
        %v337 = vunpack.c.l.b16 %v257
        %v338 = vunpack.c.l.b16 %v258
        %v339 = vunpack.c.l.b16 %v259
        %v340 = vunpack.c.l.b16 %v260
        %v341 = vunpack.c.l.b16 %v261
        %v342 = vunpack.c.l.b16 %v262
        %v343 = vunpack.c.l.b16 %v263
        %v344 = vunpack.c.l.b16 %v264
        %v345 = vunpack.c.l.b16 %v265
        %v346 = vunpack.c.l.b16 %v266
        %v347 = vunpack.c.l.b16 %v267
        %v348 = vpack.c.b16 %v333, %v332
        %v349 = vpack.c.b16 %v335, %v334
        %v350 = vpack.c.b16 %v337, %v336
        %v351 = vpack.c.b16 %v339, %v338
        %v352 = vpack.c.b16 %v341, %v340
        %v353 = vpack.c.b16 %v343, %v342
        %v354 = vpack.c.b16 %v345, %v344
        %v355 = vpack.c.b16 %v347, %v346
        %364 = vmatprep.subr.bf16.mxu0 0
        %365 = vmatpush1.bf16.msra.mxu0 %v348
        %366 = vmatprep.subr.bf16.mxu0 0
        %367 = vmatpush1.bf16.msra.mxu0 %v349
        %368 = vmatprep.subr.bf16.mxu0 0
        %369 = vmatpush1.bf16.msra.mxu0 %v350
        %370 = vmatprep.subr.bf16.mxu0 0
        %371 = vmatpush1.bf16.msra.mxu0 %v351
        %372 = vmatprep.subr.bf16.mxu0 0
        %373 = vmatpush1.bf16.msra.mxu0 %v352
        %374 = vmatprep.subr.bf16.mxu0 0
        %375 = vmatpush1.bf16.msra.mxu0 %v353
        %376 = vmatprep.subr.bf16.mxu0 0
        %377 = vmatpush1.bf16.msra.mxu0 %v354
        %378 = vmatprep.subr.bf16.mxu0 0
        %379 = vmatpush1.bf16.msra.mxu0 %v355
        %380 = vmatprep.subr.bf16.mxu0 0
        %381 = vmatpush1.bf16.msra.mxu0 0
        %382 = vmatprep.subr.bf16.mxu0 0
        %383 = vmatpush1.bf16.msra.mxu0 0
        %384 = vmatprep.subr.bf16.mxu0 0
        %385 = vmatpush1.bf16.msra.mxu0 0
        %386 = vmatprep.subr.bf16.mxu0 0
        %387 = vmatpush1.bf16.msra.mxu0 0
        %388 = vmatprep.subr.bf16.mxu0 0
        %389 = vmatpush1.bf16.msra.mxu0 0
        %390 = vmatprep.subr.bf16.mxu0 0
        %391 = vmatpush1.bf16.msra.mxu0 0
        %392 = vmatprep.subr.bf16.mxu0 0
        %393 = vmatpush1.bf16.msra.mxu0 0
        %394 = vmatprep.subr.bf16.mxu0 0
        %395 = vmatpush1.bf16.msra.mxu0 0
        %396 = vmatprep.mubr.bf16.mxu0 0
        %397 = vmatmul.mubr.bf16.gmra.mrb[0].mxu0 %v300
        %v398 = vpop.f32.mrb[0].mxu0
        %v399 = vadd.f32 0.0, %v398
        %v400 = vpop.f32.mrb[0].mxu0
        %v401 = vpop.f32.mrb[0].mxu0
        %v402 = vadd.f32 0.0, %v401
        %v403 = vpop.f32.mrb[0].mxu0
        %404 = vmatprep.mubr.bf16.mxu0 0
        %405 = vmatmul.mubr.bf16.gmra.mrb[0].mxu0 %v301
        %v406 = vpop.f32.mrb[0].mxu0
        %v407 = vadd.f32 0.0, %v406
        %v408 = vpop.f32.mrb[0].mxu0
        %v409 = vpop.f32.mrb[0].mxu0
        %v410 = vadd.f32 0.0, %v409
        %v411 = vpop.f32.mrb[0].mxu0
        %412 = vmatprep.mubr.bf16.mxu0 0
        %413 = vmatmul.mubr.bf16.gmra.mrb[0].mxu0 %v302
        %v414 = vpop.f32.mrb[0].mxu0
        %v415 = vadd.f32 0.0, %v414
        %v416 = vpop.f32.mrb[0].mxu0
        %v417 = vpop.f32.mrb[0].mxu0
        %v418 = vadd.f32 0.0, %v417
        %v419 = vpop.f32.mrb[0].mxu0
        %420 = vmatprep.mubr.bf16.mxu0 0
        %421 = vmatmul.mubr.bf16.gmra.mrb[0].mxu0 %v303
        %v422 = vpop.f32.mrb[0].mxu0
        %v423 = vadd.f32 0.0, %v422
        %v424 = vpop.f32.mrb[0].mxu0
        %v425 = vpop.f32.mrb[0].mxu0
        %v426 = vadd.f32 0.0, %v425
        %v427 = vpop.f32.mrb[0].mxu0
        %428 = vmatprep.mubr.bf16.mxu0 0
        %429 = vmatmul.mubr.bf16.gmra.mrb[0].mxu0 %v304
        %v430 = vpop.f32.mrb[0].mxu0
        %v431 = vadd.f32 0.0, %v430
        %v432 = vpop.f32.mrb[0].mxu0
        %v433 = vpop.f32.mrb[0].mxu0
        %v434 = vadd.f32 0.0, %v433
        %v435 = vpop.f32.mrb[0].mxu0
        %436 = vmatprep.mubr.bf16.mxu0 0
        %437 = vmatmul.mubr.bf16.gmra.mrb[0].mxu0 %v305
        %v438 = vpop.f32.mrb[0].mxu0
        %v439 = vadd.f32 0.0, %v438
        %v440 = vpop.f32.mrb[0].mxu0
        %v441 = vpop.f32.mrb[0].mxu0
        %v442 = vadd.f32 0.0, %v441
        %v443 = vpop.f32.mrb[0].mxu0
        %444 = vmatprep.mubr.bf16.mxu0 0
        %445 = vmatmul.mubr.bf16.gmra.mrb[0].mxu0 %v306
        %v446 = vpop.f32.mrb[0].mxu0
        %v447 = vadd.f32 0.0, %v446
        %v448 = vpop.f32.mrb[0].mxu0
        %v449 = vpop.f32.mrb[0].mxu0
        %v450 = vadd.f32 0.0, %v449
        %v451 = vpop.f32.mrb[0].mxu0
        %452 = vmatprep.mubr.bf16.mxu0 0
        %453 = vmatmul.mubr.bf16.gmra.mrb[0].mxu0 %v307
        %v454 = vpop.f32.mrb[0].mxu0
        %v455 = vadd.f32 0.0, %v454
        %v456 = vpop.f32.mrb[0].mxu0
        %v457 = vpop.f32.mrb[0].mxu0
        %v458 = vadd.f32 0.0, %v457
        %v459 = vpop.f32.mrb[0].mxu0
        %460 = vdwg.mxu0
        %v461 = vpack.c.bf16 %v402, %v399
        %v462 = vpack.c.bf16 %v410, %v407
        %v463 = vpack.c.bf16 %v418, %v415
        %v464 = vpack.c.bf16 %v426, %v423
        %v465 = vpack.c.bf16 %v434, %v431
        %v466 = vpack.c.bf16 %v442, %v439
        %v467 = vpack.c.bf16 %v450, %v447
        %v468 = vpack.c.bf16 %v458, %v455
        %v477 = vunpack.c.l.b16 %v461
        %v478 = vunpack.c.h.b16 %v461
        %v479 = vunpack.c.l.b16 %v462
        %v480 = vunpack.c.h.b16 %v462
        %v481 = vunpack.c.l.b16 %v463
        %v482 = vunpack.c.h.b16 %v463
        %v483 = vunpack.c.l.b16 %v464
        %v484 = vunpack.c.h.b16 %v464
        %v485 = vunpack.c.l.b16 %v465
        %v486 = vunpack.c.h.b16 %v465
        %v487 = vunpack.c.l.b16 %v466
        %v488 = vunpack.c.h.b16 %v466
        %v489 = vunpack.c.l.b16 %v467
        %v490 = vunpack.c.h.b16 %v467
        %v491 = vunpack.c.l.b16 %v468
        %v492 = vunpack.c.h.b16 %v468
        %v493 = vpack.c.b16 %v477, %v477
        %v494 = vpack.c.b16 %v478, %v478
        %v495 = vpack.c.b16 %v479, %v479
        %v496 = vpack.c.b16 %v480, %v480
        %v497 = vpack.c.b16 %v481, %v481
        %v498 = vpack.c.b16 %v482, %v482
        %v499 = vpack.c.b16 %v483, %v483
        %v500 = vpack.c.b16 %v484, %v484
        %v501 = vpack.c.b16 %v485, %v485
        %v502 = vpack.c.b16 %v486, %v486
        %v503 = vpack.c.b16 %v487, %v487
        %v504 = vpack.c.b16 %v488, %v488
        %v505 = vpack.c.b16 %v489, %v489
        %v506 = vpack.c.b16 %v490, %v490
        %v507 = vpack.c.b16 %v491, %v491
        %v508 = vpack.c.b16 %v492, %v492
        %525 = vst [vmem:[%s222] sm:$0xf] %v493
        %526 = vst [vmem:[%s222 + $0x4] sm:$0xf] %v494
        %527 = vst [vmem:[%s222 + $0x8] sm:$0xf] %v495
        %528 = vst [vmem:[%s222 + $0xc] sm:$0xf] %v496
        %529 = vst [vmem:[%s222 + $0x10] sm:$0xf] %v497
        %530 = vst [vmem:[%s222 + $0x14] sm:$0xf] %v498
        %531 = vst [vmem:[%s222 + $0x18] sm:$0xf] %v499
        %532 = vst [vmem:[%s222 + $0x1c] sm:$0xf] %v500
        %533 = vst [vmem:[%s222 + $0x20] sm:$0xf] %v501
        %534 = vst [vmem:[%s222 + $0x24] sm:$0xf] %v502
        %535 = vst [vmem:[%s222 + $0x28] sm:$0xf] %v503
        %536 = vst [vmem:[%s222 + $0x2c] sm:$0xf] %v504
        %537 = vst [vmem:[%s222 + $0x30] sm:$0xf] %v505
        %538 = vst [vmem:[%s222 + $0x34] sm:$0xf] %v506
        %539 = vst [vmem:[%s222 + $0x38] sm:$0xf] %v507
        %540 = vst [vmem:[%s222 + $0x3c] sm:$0xf] %v508
        %v541 = vld [vmem:[#allocation8] sm:$0x1]
        %v542 = vadd.f32 %v399, %v402
        %v543 = vadd.f32 %v542, %v407
        %v544 = vadd.f32 %v543, %v410
        %v545 = vadd.f32 %v544, %v415
        %v546 = vadd.f32 %v545, %v418
        %v547 = vadd.f32 %v546, %v423
        %v548 = vadd.f32 %v547, %v426
        %v549 = vadd.f32 %v548, %v431
        %v550 = vadd.f32 %v549, %v434
        %v551 = vadd.f32 %v550, %v439
        %v552 = vadd.f32 %v551, %v442
        %v553 = vadd.f32 %v552, %v447
        %v554 = vadd.f32 %v553, %v450
        %v555 = vadd.f32 %v554, %v455
        %v556 = vadd.f32 %v555, %v458
        %v557 = vrot.slane %v556, 4
        %v558 = vadd.f32 %v556, %v557
        %v559 = vrot.slane %v558, 2
        %v560 = vadd.f32 %v558, %v559
        %v561 = vrot.slane %v560, 1
        %v562 = vadd.f32 %v560, %v561
        %v563 = vadd.f32 %v541, %v562
        %564 = vst [vmem:[#allocation8] sm:$0x1] %v563
        %v565 = vld [vmem:[#allocation10] sm:$0x1]
        %v566 = vmul.f32 %v399, %v399
        %v567 = vmul.f32 %v402, %v402
        %v568 = vmul.f32 %v407, %v407
        %v569 = vmul.f32 %v410, %v410
        %v570 = vmul.f32 %v415, %v415
        %v571 = vmul.f32 %v418, %v418
        %v572 = vmul.f32 %v423, %v423
        %v573 = vmul.f32 %v426, %v426
        %v574 = vmul.f32 %v431, %v431
        %v575 = vmul.f32 %v434, %v434
        %v576 = vmul.f32 %v439, %v439
        %v577 = vmul.f32 %v442, %v442
        %v578 = vmul.f32 %v447, %v447
        %v579 = vmul.f32 %v450, %v450
        %v580 = vmul.f32 %v455, %v455
        %v581 = vmul.f32 %v458, %v458
        %v582 = vadd.f32 %v566, %v567
        %v583 = vadd.f32 %v582, %v568
        %v584 = vadd.f32 %v583, %v569
        %v585 = vadd.f32 %v584, %v570
        %v586 = vadd.f32 %v585, %v571
        %v587 = vadd.f32 %v586, %v572
        %v588 = vadd.f32 %v587, %v573
        %v589 = vadd.f32 %v588, %v574
        %v590 = vadd.f32 %v589, %v575
        %v591 = vadd.f32 %v590, %v576
        %v592 = vadd.f32 %v591, %v577
        %v593 = vadd.f32 %v592, %v578
        %v594 = vadd.f32 %v593, %v579
        %v595 = vadd.f32 %v594, %v580
        %v596 = vadd.f32 %v595, %v581
        %v597 = vrot.slane %v596, 4
        %v598 = vadd.f32 %v596, %v597
        %v599 = vrot.slane %v598, 2
        %v600 = vadd.f32 %v598, %v599
        %v601 = vrot.slane %v600, 1
        %v602 = vadd.f32 %v600, %v601
        %v603 = vadd.f32 %v565, %v602
        %604 = vst [vmem:[#allocation10] sm:$0x1] %v603
        %s605 = sand.u32 %s79, 1
        %s606 = scalar_lea.sflag [#allocation4], %s605
        %s607 = sand.u32 %s79, 1
        %s608 = smul.addr %s607, 64
        %s609 = scalar_lea.vmem [#allocation7], %s608
        // Predicated region
        $region41: #{tpu_custom_call.1} parent=27 // pred_check
          %p610 = pneg %p89
        $region42: #{tpu_custom_call.1} parent=27 // pred_check_branch
          %612 = sbr.rel (%p610) target = $region44
        $region43: #{tpu_custom_call.1} parent=27 // pred_region
          %s613 = smul.u32 16, %s24
          %s615 = ssub.s32 1024, 1024
          %616 = vsyncadd %s606, %s615
          %s617 = smul.addr %s613, 64
          %s618 = scalar_lea.hbm %s2, %s617
          %s619 = sshll.u32 %s609, 4
          %s620 = int_to_ptr.vmem [resolvable:$true] %s619
          %625 = dma.vmem_to_hbm [thread:$0]  %s620, 1024, %s618, %s606, 64, 64, 4
        $region44: #{tpu_custom_call.1} parent=27 // pred_fallthru
          _
        // Predicated region
        $region45: #{tpu_custom_call.1} parent=27 // pred_check
          %p626 = pneg %p110
        $region46: #{tpu_custom_call.1} parent=27 // pred_check_branch
          %628 = sbr.rel (%p626) target = $region48
        $region47: #{tpu_custom_call.1} parent=27 // pred_region
          %s630 = ssub.s32 16, 16
          %631 = vsyncadd [#allocation9], %s630
          %s633 = sshll.u32 [#allocation8], 4
          %s634 = int_to_ptr.vmem [resolvable:$true] %s633
          %636 = dma.vmem_to_hbm [thread:$0]  %s634, 16, %s3, [#allocation9]
        $region48: #{tpu_custom_call.1} parent=27 // pred_fallthru
          _
        // Predicated region
        $region49: #{tpu_custom_call.1} parent=27 // pred_check
          %p637 = pneg %p131
        $region50: #{tpu_custom_call.1} parent=27 // pred_check_branch
          %639 = sbr.rel (%p637) target = $region52
        $region51: #{tpu_custom_call.1} parent=27 // pred_region
          %s641 = ssub.s32 16, 16
          %642 = vsyncadd [#allocation9], %s641
          %s644 = sshll.u32 [#allocation10], 4
          %s645 = int_to_ptr.vmem [resolvable:$true] %s644
          %647 = dma.vmem_to_hbm [thread:$0]  %s645, 16, %s4, [#allocation9]
        $region52: #{tpu_custom_call.1} parent=27 // pred_fallthru
          _
        // Predicated region
        $region53: #{tpu_custom_call.1} parent=27 // pred_check
          %p648 = pneg %p110
        $region54: #{tpu_custom_call.1} parent=27 // pred_check_branch
          %650 = sbr.rel (%p648) target = $region56
        $region55: #{tpu_custom_call.1} parent=27 // pred_region
          %651 = dma.done [#allocation9], 16
        $region56: #{tpu_custom_call.1} parent=27 // pred_fallthru
          _
        // Predicated region
        $region57: #{tpu_custom_call.1} parent=27 // pred_check
          %p652 = pneg %p131
        $region58: #{tpu_custom_call.1} parent=27 // pred_check_branch
          %654 = sbr.rel (%p652) target = $region60
        $region59: #{tpu_custom_call.1} parent=27 // pred_region
          %655 = dma.done [#allocation9], 16
        $region60: #{tpu_custom_call.1} parent=27 // pred_fallthru
          _
      $region28: #{tpu_custom_call.1} parent=5 // pred_fallthru
        _
      %p656 = scmp.le.s32.totalorder 2, %s19
      // Predicated region
      $region61: #{tpu_custom_call.1} parent=5 // pred_check
        %p657 = pneg %p656
      $region62: #{tpu_custom_call.1} parent=5 // pred_check_branch
        %659 = sbr.rel (%p657) target = $region64
      $region63: #{tpu_custom_call.1} parent=5 // pred_region
        %s660 = ssub.s32 %s19, 2
        // Predicated region
        $region65: #{tpu_custom_call.1} parent=63 // pred_check
          %p661 = pneg %p95
        $region66: #{tpu_custom_call.1} parent=63 // pred_check_branch
          %663 = sbr.rel (%p661) target = $region68
        $region67: #{tpu_custom_call.1} parent=63 // pred_region
          %s664 = sand.u32 %s80, 1
          %s665 = scalar_lea.sflag [#allocation4], %s664
          %s666 = sand.u32 %s80, 1
          %s667 = smul.addr %s666, 64
          %s668 = scalar_lea.vmem [#allocation7], %s667
          %669 = dma.done %s665, 1024
        $region68: #{tpu_custom_call.1} parent=63 // pred_fallthru
          _
      $region64: #{tpu_custom_call.1} parent=5 // pred_fallthru
        _
    $region6: #{tpu_custom_call.1} parent=1 // loop_footer
      %s23 = sadd.s32 1, %s19
    $region7: #{tpu_custom_call.1} parent=1 // loop_footer_branch
      %18 = sbr.rel target = $region3
    $region8: #{tpu_custom_call.1} parent=1 // loop_exit
      _
    %670 = vsyncpa [#allocation3], 1
    %s671 = scalar_lea.sflag [#allocation3], 1
    %672 = vsyncpa %s671, 1
    %673 = vsyncpa [#allocation6], 1
    %674 = vsyncpa [#allocation4], 1
    %s675 = scalar_lea.sflag [#allocation4], 1
    %676 = vsyncpa %s675, 1
    %677 = vsyncpa [#allocation9], 1

</llo_original>
